<compile_context>
chip_gen: v6e
topology: v6e:2x2x1
jax: 0.10.0
libtpu: 0.0.40
codegen_flags: <defaults>
</compile_context>

<pallas_src>
import math
import jax
import jax.numpy as jnp
from jax.experimental import pallas as pl
from jax.experimental.pallas import tpu as pltpu


def _round_up(x, m):
    return ((x + m - 1) // m) * m


def dqn_mlp_kernel(x_ref, w1_ref, b1_ref, w2_ref, b2_ref, w3_ref, b3_ref, o_ref):
    # fc1: bf16 MXU inputs, f32 accumulate; bias-add + ReLU stay in f32
    # (v5e has no bf16 VPU, so elementwise work is kept f32 on all chips).
    h1 = jnp.dot(x_ref[...], w1_ref[...], preferred_element_type=jnp.float32)
    h1 = jnp.maximum(h1 + b1_ref[...], 0.0)
    # TODO(synk): nn.Dropout(0.2) is identity at inference time; no stochastic mask here.
    # fc2
    h2 = jnp.dot(h1.astype(jnp.bfloat16), w2_ref[...],
                 preferred_element_type=jnp.float32)
    h2 = jnp.maximum(h2 + b2_ref[...], 0.0)
    # fc3 (Q-values, no activation); output block is lane-dense (padded to 128)
    out = jnp.dot(h2.astype(jnp.bfloat16), w3_ref[...],
                  preferred_element_type=jnp.float32)
    o_ref[...] = (out + b3_ref[...]).astype(o_ref.dtype)


def dqn_forward(x, params, action_dim):
    """x: [B, state_dim] float32. Returns [B, action_dim] float32 Q-values."""
    w1, b1, w2, b2, w3, b3 = params  # w*: bf16 [in, out]; b*: f32 [1, out(_pad)]
    B, S = x.shape
    H = w1.shape[1]
    A_pad = w3.shape[1]  # padded to a multiple of 128

    # Batch blocking: 256 rows fills the 256-wide MXU on v6e/v7x; small
    # batches use a single lane/sublane-aligned block.
    block_b = 256 if B >= 256 else _round_up(B, 8)
    B_pad = _round_up(B, block_b)

    x_bf16 = x.astype(jnp.bfloat16)
    if B_pad != B:
        x_bf16 = jnp.pad(x_bf16, ((0, B_pad - B), (0, 0)))

    grid = (B_pad // block_b,)

    flops = 2 * B_pad * (S * H + H * H + H * A_pad)
    bytes_accessed = (
        x_bf16.size * 2                       # input activations (bf16)
        + (w1.size + w2.size + w3.size) * 2   # weights (bf16)
        + (b1.size + b2.size + b3.size) * 4   # biases (f32)
        + B_pad * A_pad * 4                   # output (f32)
    )

    out_pad = pl.pallas_call(
        dqn_mlp_kernel,
        out_shape=jax.ShapeDtypeStruct((B_pad, A_pad), jnp.float32),
        grid_spec=pltpu.PrefetchScalarGridSpec(
            num_scalar_prefetch=0,
            grid=grid,
            in_specs=[
                pl.BlockSpec((block_b, S), lambda i: (i, 0)),   # states: tiled over batch
                pl.BlockSpec((S, H), lambda i: (0, 0)),         # w1 resident
                pl.BlockSpec((1, H), lambda i: (0, 0)),         # b1 resident
                pl.BlockSpec((H, H), lambda i: (0, 0)),         # w2 resident
                pl.BlockSpec((1, H), lambda i: (0, 0)),         # b2 resident
                pl.BlockSpec((H, A_pad), lambda i: (0, 0)),     # w3 resident
                pl.BlockSpec((1, A_pad), lambda i: (0, 0)),     # b3 resident
            ],
            out_specs=pl.BlockSpec((block_b, A_pad), lambda i: (i, 0)),
        ),
        compiler_params=pltpu.CompilerParams(
            dimension_semantics=("parallel",)),
        cost_estimate=pl.CostEstimate(
            flops=flops, transcendentals=0, bytes_accessed=bytes_accessed),
    )(x_bf16, w1, b1, w2, b2, w3, b3)

    # Slice away batch padding and the padded (zero-weight) action lanes so any
    # downstream argmax over actions sees exactly the real 100 Q-values.
    return out_pad[:B, :action_dim]


def xavier_uniform(key, fan_in, fan_out, dtype=jnp.float32):
    bound = math.sqrt(6.0 / (fan_in + fan_out))
    return jax.random.uniform(key, (fan_in, fan_out), dtype, minval=-bound, maxval=bound)


def init_params(key, state_dim=128, hidden_dim=256, action_dim=100):
    """Weights as bf16 [in, out]; biases f32; fc3 padded to 128 output lanes."""
    a_pad = _round_up(action_dim, 128)
    k1, k2, k3 = jax.random.split(key, 3)
    w1 = xavier_uniform(k1, state_dim, hidden_dim).astype(jnp.bfloat16)
    b1 = jnp.zeros((1, hidden_dim), jnp.float32)
    w2 = xavier_uniform(k2, hidden_dim, hidden_dim).astype(jnp.bfloat16)
    b2 = jnp.zeros((1, hidden_dim), jnp.float32)
    w3 = xavier_uniform(k3, hidden_dim, action_dim)
    w3 = jnp.pad(w3, ((0, 0), (0, a_pad - action_dim))).astype(jnp.bfloat16)
    b3 = jnp.zeros((1, a_pad), jnp.float32)
    return (w1, b1, w2, b2, w3, b3)


def reference_forward(x, params, action_dim):
    """Pure-JAX reference using identical bf16-weight / f32-accumulate math."""
    w1, b1, w2, b2, w3, b3 = params
    xb = x.astype(jnp.bfloat16)
    h1 = jnp.maximum(jnp.dot(xb, w1, preferred_element_type=jnp.float32) + b1, 0.0)
    h2 = jnp.maximum(
        jnp.dot(h1.astype(jnp.bfloat16), w2, preferred_element_type=jnp.float32) + b2, 0.0)
    out = jnp.dot(h2.astype(jnp.bfloat16), w3, preferred_element_type=jnp.float32) + b3
    return out[:, :action_dim]


if __name__ == "__main__":
    key = jax.random.PRNGKey(0)
    pkey, xkey = jax.random.split(key)

    STATE_DIM, HIDDEN_DIM, ACTION_DIM = 128, 256, 100
    BATCH = 32  # MLConfig.batch_size

    params = init_params(pkey, STATE_DIM, HIDDEN_DIM, ACTION_DIM)
    x = jax.random.normal(xkey, (BATCH, STATE_DIM), jnp.float32)

    q_values = dqn_forward(x, params, ACTION_DIM)
    jax.block_until_ready(q_values)

    q_ref = reference_forward(x, params, ACTION_DIM)
    assert q_values.shape == (BATCH, ACTION_DIM)
    assert jnp.allclose(q_values, q_ref, atol=1e-2, rtol=1e-2), (
        float(jnp.max(jnp.abs(q_values - q_ref))))

    print("KERNEL_OK")
</pallas_src>

<mosaic_0001>
module attributes {stable_mosaic.version = 11 : i64} {
  func.func @dqn_mlp_kernel(%arg0: i32, %arg1: memref<32x128xbf16, #tpu.memory_space<vmem>>, %arg2: memref<128x256xbf16, #tpu.memory_space<vmem>>, %arg3: memref<1x256xf32, #tpu.memory_space<vmem>>, %arg4: memref<256x256xbf16, #tpu.memory_space<vmem>>, %arg5: memref<1x256xf32, #tpu.memory_space<vmem>>, %arg6: memref<256x128xbf16, #tpu.memory_space<vmem>>, %arg7: memref<1x128xf32, #tpu.memory_space<vmem>>, %arg8: memref<32x128xf32, #tpu.memory_space<vmem>>) attributes {dimension_semantics = [#tpu.dimension_semantics<parallel>], iteration_bounds = array<i64: 1>, scalar_prefetch = 0 : i64, scratch_operands = 0 : i64, tpu.core_type = #tpu.core_type<tc>, window_params = [{transform_indices = @transform_0, window_bounds = array<i64: 32, 128>}, {pipeline_mode = #tpu.pipeline_mode<synchronous>, transform_indices = @transform_1, window_bounds = array<i64: 128, 256>}, {pipeline_mode = #tpu.pipeline_mode<synchronous>, transform_indices = @transform_2, window_bounds = array<i64: 1, 256>}, {pipeline_mode = #tpu.pipeline_mode<synchronous>, transform_indices = @transform_3, window_bounds = array<i64: 256, 256>}, {pipeline_mode = #tpu.pipeline_mode<synchronous>, transform_indices = @transform_4, window_bounds = array<i64: 1, 256>}, {pipeline_mode = #tpu.pipeline_mode<synchronous>, transform_indices = @transform_5, window_bounds = array<i64: 256, 128>}, {pipeline_mode = #tpu.pipeline_mode<synchronous>, transform_indices = @transform_6, window_bounds = array<i64: 1, 128>}, {transform_indices = @transform_7, window_bounds = array<i64: 32, 128>}]} {
    %c0 = arith.constant 0 : index
    %c0_0 = arith.constant 0 : index
    %0 = vector.load %arg1[%c0, %c0_0] : memref<32x128xbf16, #tpu.memory_space<vmem>>, vector<32x128xbf16>
    %c0_1 = arith.constant 0 : index
    %c0_2 = arith.constant 0 : index
    %1 = vector.load %arg2[%c0_1, %c0_2] : memref<128x256xbf16, #tpu.memory_space<vmem>>, vector<128x256xbf16>
    %cst = arith.constant dense<0.000000e+00> : vector<32x256xf32>
    %2 = tpu.matmul %0, %1, %cst {dimension_numbers = #tpu.dot_dimension_numbers<[1], [0], [0], [1], [0, 0, 1, 1], [], []>} : vector<32x128xbf16>, vector<128x256xbf16>, vector<32x256xf32> -> vector<32x256xf32>
    %c0_3 = arith.constant 0 : index
    %c0_4 = arith.constant 0 : index
    %3 = vector.load %arg3[%c0_3, %c0_4] : memref<1x256xf32, #tpu.memory_space<vmem>>, vector<1x256xf32>
    %4 = vector.broadcast %3 : vector<1x256xf32> to vector<32x256xf32>
    %5 = arith.addf %2, %4 : vector<32x256xf32>
    %cst_5 = arith.constant 0.000000e+00 : f32
    %6 = vector.broadcast %cst_5 : f32 to vector<32x256xf32>
    %7 = arith.maximumf %5, %6 : vector<32x256xf32>
    %8 = arith.truncf %7 : vector<32x256xf32> to vector<32x256xbf16>
    %c0_6 = arith.constant 0 : index
    %c0_7 = arith.constant 0 : index
    %9 = vector.load %arg4[%c0_6, %c0_7] : memref<256x256xbf16, #tpu.memory_space<vmem>>, vector<256x256xbf16>
    %cst_8 = arith.constant dense<0.000000e+00> : vector<32x256xf32>
    %10 = tpu.matmul %8, %9, %cst_8 {dimension_numbers = #tpu.dot_dimension_numbers<[1], [0], [0], [1], [0, 0, 1, 1], [], []>} : vector<32x256xbf16>, vector<256x256xbf16>, vector<32x256xf32> -> vector<32x256xf32>
    %c0_9 = arith.constant 0 : index
    %c0_10 = arith.constant 0 : index
    %11 = vector.load %arg5[%c0_9, %c0_10] : memref<1x256xf32, #tpu.memory_space<vmem>>, vector<1x256xf32>
    %12 = vector.broadcast %11 : vector<1x256xf32> to vector<32x256xf32>
    %13 = arith.addf %10, %12 : vector<32x256xf32>
    %cst_11 = arith.constant 0.000000e+00 : f32
    %14 = vector.broadcast %cst_11 : f32 to vector<32x256xf32>
    %15 = arith.maximumf %13, %14 : vector<32x256xf32>
    %16 = arith.truncf %15 : vector<32x256xf32> to vector<32x256xbf16>
    %c0_12 = arith.constant 0 : index
    %c0_13 = arith.constant 0 : index
    %17 = vector.load %arg6[%c0_12, %c0_13] : memref<256x128xbf16, #tpu.memory_space<vmem>>, vector<256x128xbf16>
    %cst_14 = arith.constant dense<0.000000e+00> : vector<32x128xf32>
    %18 = tpu.matmul %16, %17, %cst_14 {dimension_numbers = #tpu.dot_dimension_numbers<[1], [0], [0], [1], [0, 0, 1, 1], [], []>} : vector<32x256xbf16>, vector<256x128xbf16>, vector<32x128xf32> -> vector<32x128xf32>
    %c0_15 = arith.constant 0 : index
    %c0_16 = arith.constant 0 : index
    %19 = vector.load %arg7[%c0_15, %c0_16] : memref<1x128xf32, #tpu.memory_space<vmem>>, vector<1x128xf32>
    %20 = vector.broadcast %19 : vector<1x128xf32> to vector<32x128xf32>
    %21 = arith.addf %18, %20 : vector<32x128xf32>
    %c0_17 = arith.constant 0 : index
    %c0_18 = arith.constant 0 : index
    %22 = vector.load %arg8[%c0_17, %c0_18] : memref<32x128xf32, #tpu.memory_space<vmem>>, vector<32x128xf32>
    tpu.vector_store %arg8[%c0_17, %c0_18], %21 {strides = array<i32>} : memref<32x128xf32, #tpu.memory_space<vmem>>, vector<32x128xf32>,
    return
  }
  func.func @transform_0(%arg0: i32) -> (i32, i32) {
    %c0_i32 = arith.constant 0 : i32
    %c0_i32_0 = arith.constant 0 : i32
    return %arg0, %c0_i32 : i32, i32
  }
  func.func @transform_1(%arg0: i32) -> (i32, i32) {
    %c0_i32 = arith.constant 0 : i32
    %c0_i32_0 = arith.constant 0 : i32
    %c0_i32_1 = arith.constant 0 : i32
    return %c0_i32, %c0_i32_0 : i32, i32
  }
  func.func @transform_2(%arg0: i32) -> (i32, i32) {
    %c0_i32 = arith.constant 0 : i32
    %c0_i32_0 = arith.constant 0 : i32
    %c0_i32_1 = arith.constant 0 : i32
    return %c0_i32, %c0_i32_0 : i32, i32
  }
  func.func @transform_3(%arg0: i32) -> (i32, i32) {
    %c0_i32 = arith.constant 0 : i32
    %c0_i32_0 = arith.constant 0 : i32
    %c0_i32_1 = arith.constant 0 : i32
    return %c0_i32, %c0_i32_0 : i32, i32
  }
  func.func @transform_4(%arg0: i32) -> (i32, i32) {
    %c0_i32 = arith.constant 0 : i32
    %c0_i32_0 = arith.constant 0 : i32
    %c0_i32_1 = arith.constant 0 : i32
    return %c0_i32, %c0_i32_0 : i32, i32
  }
  func.func @transform_5(%arg0: i32) -> (i32, i32) {
    %c0_i32 = arith.constant 0 : i32
    %c0_i32_0 = arith.constant 0 : i32
    %c0_i32_1 = arith.constant 0 : i32
    return %c0_i32, %c0_i32_0 : i32, i32
  }
  func.func @transform_6(%arg0: i32) -> (i32, i32) {
    %c0_i32 = arith.constant 0 : i32
    %c0_i32_0 = arith.constant 0 : i32
    %c0_i32_1 = arith.constant 0 : i32
    return %c0_i32, %c0_i32_0 : i32, i32
  }
  func.func @transform_7(%arg0: i32) -> (i32, i32) {
    %c0_i32 = arith.constant 0 : i32
    %c0_i32_0 = arith.constant 0 : i32
    return %arg0, %c0_i32 : i32, i32
  }
}

</mosaic_0001>

<llo_original>
// kernel: tpu_custom_call.1
$region0: #{tpu_custom_call.1}
  #allocation0 [shape = 'u32[]', space=smem, size = 0x4, offset = 0x4, fixed_abs, tag = 'smem constant byte address 0x4 - core index']
  #allocation1 [shape = 'u32[144,128]{1,0:T(1,128)}', space=vmem, size = 0x12000, scoped, tag = 'internal scratch']
  %s0 = inlined_call_operand.hbm [shape: bf16[32,128], index: 0, kind: input, shape index: {}]
  %s1 = inlined_call_operand.hbm [shape: bf16[128,256], index: 1, kind: input, shape index: {}]
  %s2 = inlined_call_operand.vmem [shape: f32[1,256], index: 2, kind: input, shape index: {}]
  %s3 = inlined_call_operand.hbm [shape: bf16[256,256], index: 3, kind: input, shape index: {}]
  %s4 = inlined_call_operand.vmem [shape: f32[1,256], index: 4, kind: input, shape index: {}]
  %s5 = inlined_call_operand.hbm [shape: bf16[256,128], index: 5, kind: input, shape index: {}]
  %s6 = inlined_call_operand.vmem [shape: f32[1,128], index: 6, kind: input, shape index: {}]
  %s7 = inlined_call_operand.hbm [shape: f32[32,128], index: 7, kind: output, shape index: {}]
  %s8 = sld [smem:[#allocation0]]
  $region54: #{tpu_custom_call.1} parent=0
    _
  %s10 = ssub.s32 1, %s8
  %s11 = scalar_select 0, %s10, %s8
  $region1: #{tpu_custom_call.1} parent=0
    #allocation2 [shape = 'u8[8192]{0}', space=vmem, size = 0x2000, scoped, tag = 'input window, operand 0, single buffered']
    #allocation3 [shape = 's32[1]{0}', space=sflag, size = 0x4, scoped, tag = 'scoped memory for tpu_custom_call.1']
    #allocation4 [shape = 's32[1]{0}', space=sflag, size = 0x4, scoped, tag = 'scoped memory for tpu_custom_call.1']
    #allocation5 [shape = 'u8[65536]{0}', space=vmem, size = 0x10000, scoped, tag = 'input window, operand 1, single buffered']
    #allocation6 [shape = 's32[1]{0}', space=sflag, size = 0x4, scoped, tag = 'scoped memory for tpu_custom_call.1']
    #allocation7 [shape = 'u8[131072]{0}', space=vmem, size = 0x20000, scoped, tag = 'input window, operand 3, single buffered']
    #allocation8 [shape = 'u8[65536]{0}', space=vmem, size = 0x10000, scoped, tag = 'input window, operand 5, single buffered']
    #allocation9 [shape = 's32[1]{0}', space=sflag, size = 0x4, scoped, tag = 'scoped memory for tpu_custom_call.1']
    #allocation10 [shape = 'u8[16384]{0}', space=vmem, size = 0x4000, scoped, tag = 'output window, operand 0, single buffered']
    %12 = vsyncpa [#allocation3], 0
    %13 = vsyncpa [#allocation6], 0
    %14 = vsyncpa [#allocation9], 0
    %15 = vsyncpa [#allocation4], 0
    // Predicated region
    $region2: #{tpu_custom_call.1} parent=1 // pred_check
      _
    $region3: #{tpu_custom_call.1} parent=1 // pred_check_branch
      %17 = sbr.rel (0) target = $region5
    $region4: #{tpu_custom_call.1} parent=1 // pred_region
      %s19 = ssub.s32 256, 256
      %20 = vsyncadd [#allocation3], %s19
      %s21 = sshll.u32 [#allocation2], 4
      %s22 = int_to_ptr.vmem [resolvable:$true] %s21
      %27 = dma.hbm_to_vmem [thread:$0]  %s0, 256, %s22, [#allocation3], 64, 64, 4
    $region5: #{tpu_custom_call.1} parent=1 // pred_fallthru
      _
    // Predicated region
    $region6: #{tpu_custom_call.1} parent=1 // pred_check
      _
    $region7: #{tpu_custom_call.1} parent=1 // pred_check_branch
      %29 = sbr.rel (0) target = $region9
    $region8: #{tpu_custom_call.1} parent=1 // pred_region
      %s31 = ssub.s32 2048, 2048
      %32 = vsyncadd [#allocation6], %s31
      %s33 = sshll.u32 [#allocation5], 4
      %s34 = int_to_ptr.vmem [resolvable:$true] %s33
      %39 = dma.hbm_to_vmem [thread:$0]  %s1, 2048, %s34, [#allocation6], 128, 128, 8
    $region9: #{tpu_custom_call.1} parent=1 // pred_fallthru
      _
    // Predicated region
    $region10: #{tpu_custom_call.1} parent=1 // pred_check
      _
    $region11: #{tpu_custom_call.1} parent=1 // pred_check_branch
      %41 = sbr.rel (0) target = $region13
    $region12: #{tpu_custom_call.1} parent=1 // pred_region
      _
    $region13: #{tpu_custom_call.1} parent=1 // pred_fallthru
      _
    // Predicated region
    $region14: #{tpu_custom_call.1} parent=1 // pred_check
      _
    $region15: #{tpu_custom_call.1} parent=1 // pred_check_branch
      %43 = sbr.rel (0) target = $region17
    $region16: #{tpu_custom_call.1} parent=1 // pred_region
      %s45 = ssub.s32 4096, 4096
      %46 = vsyncadd [#allocation6], %s45
      %s47 = sshll.u32 [#allocation7], 4
      %s48 = int_to_ptr.vmem [resolvable:$true] %s47
      %53 = dma.hbm_to_vmem [thread:$0]  %s3, 4096, %s48, [#allocation6], 128, 128, 8
    $region17: #{tpu_custom_call.1} parent=1 // pred_fallthru
      _
    // Predicated region
    $region18: #{tpu_custom_call.1} parent=1 // pred_check
      _
    $region19: #{tpu_custom_call.1} parent=1 // pred_check_branch
      %55 = sbr.rel (0) target = $region21
    $region20: #{tpu_custom_call.1} parent=1 // pred_region
      _
    $region21: #{tpu_custom_call.1} parent=1 // pred_fallthru
      _
    // Predicated region
    $region22: #{tpu_custom_call.1} parent=1 // pred_check
      _
    $region23: #{tpu_custom_call.1} parent=1 // pred_check_branch
      %57 = sbr.rel (0) target = $region25
    $region24: #{tpu_custom_call.1} parent=1 // pred_region
      %s59 = ssub.s32 2048, 2048
      %60 = vsyncadd [#allocation9], %s59
      %s61 = sshll.u32 [#allocation8], 4
      %s62 = int_to_ptr.vmem [resolvable:$true] %s61
      %67 = dma.hbm_to_vmem [thread:$0]  %s5, 2048, %s62, [#allocation9], 64, 64, 4
    $region25: #{tpu_custom_call.1} parent=1 // pred_fallthru
      _
    // Predicated region
    $region26: #{tpu_custom_call.1} parent=1 // pred_check
      _
    $region27: #{tpu_custom_call.1} parent=1 // pred_check_branch
      %69 = sbr.rel (0) target = $region29
    $region28: #{tpu_custom_call.1} parent=1 // pred_region
      _
    $region29: #{tpu_custom_call.1} parent=1 // pred_fallthru
      _
    // Predicated region
    $region30: #{tpu_custom_call.1} parent=1 // pred_check
      _
    $region31: #{tpu_custom_call.1} parent=1 // pred_check_branch
      %71 = sbr.rel (0) target = $region33
    $region32: #{tpu_custom_call.1} parent=1 // pred_region
      %72 = dma.done [#allocation3], 256
    $region33: #{tpu_custom_call.1} parent=1 // pred_fallthru
      _
    // Predicated region
    $region34: #{tpu_custom_call.1} parent=1 // pred_check
      _
    $region35: #{tpu_custom_call.1} parent=1 // pred_check_branch
      %74 = sbr.rel (0) target = $region37
    $region36: #{tpu_custom_call.1} parent=1 // pred_region
      %75 = dma.done [#allocation6], 2048
    $region37: #{tpu_custom_call.1} parent=1 // pred_fallthru
      _
    // Predicated region
    $region38: #{tpu_custom_call.1} parent=1 // pred_check
      _
    $region39: #{tpu_custom_call.1} parent=1 // pred_check_branch
      %77 = sbr.rel (0) target = $region41
    $region40: #{tpu_custom_call.1} parent=1 // pred_region
      %78 = dma.done [#allocation6], 4096
    $region41: #{tpu_custom_call.1} parent=1 // pred_fallthru
      _
    // Predicated region
    $region42: #{tpu_custom_call.1} parent=1 // pred_check
      _
    $region43: #{tpu_custom_call.1} parent=1 // pred_check_branch
      %80 = sbr.rel (0) target = $region45
    $region44: #{tpu_custom_call.1} parent=1 // pred_region
      %81 = dma.done [#allocation9], 2048
    $region45: #{tpu_custom_call.1} parent=1 // pred_fallthru
      _
    %v83 = vld [vmem:[#allocation2] sm:$0xf]
    %v84 = vld [vmem:[#allocation2 + $0x4] sm:$0xf]
    %v85 = vld [vmem:[#allocation2 + $0x8] sm:$0xf]
    %v86 = vld [vmem:[#allocation2 + $0xc] sm:$0xf]
    %v87 = vld [vmem:[#allocation5] sm:$0xff]
    %v88 = vld [vmem:[#allocation5 + $0x8] sm:$0xff]
    %v89 = vld [vmem:[#allocation5 + $0x10] sm:$0xff]
    %v90 = vld [vmem:[#allocation5 + $0x18] sm:$0xff]
    %v91 = vld [vmem:[#allocation5 + $0x20] sm:$0xff]
    %v92 = vld [vmem:[#allocation5 + $0x28] sm:$0xff]
    %v93 = vld [vmem:[#allocation5 + $0x30] sm:$0xff]
    %v94 = vld [vmem:[#allocation5 + $0x38] sm:$0xff]
    %v95 = vld [vmem:[#allocation5 + $0x40] sm:$0xff]
    %v96 = vld [vmem:[#allocation5 + $0x48] sm:$0xff]
    %v97 = vld [vmem:[#allocation5 + $0x50] sm:$0xff]
    %v98 = vld [vmem:[#allocation5 + $0x58] sm:$0xff]
    %v99 = vld [vmem:[#allocation5 + $0x60] sm:$0xff]
    %v100 = vld [vmem:[#allocation5 + $0x68] sm:$0xff]
    %v101 = vld [vmem:[#allocation5 + $0x70] sm:$0xff]
    %v102 = vld [vmem:[#allocation5 + $0x78] sm:$0xff]
    %v103 = vld [vmem:[%s2] sm:$0x3]
    %v105 = vlaneseq
    %v106 = vshrl.u32 %v105, 7
    %v107 = vsub.s32 0, %v106
    %v108 = vrot.slane %v103, %v107
    %v109 = vlaneseq
    %v110 = vshrl.u32 %v109, 7
    %v111 = vsub.s32 1, %v110
    %v112 = vrot.slane %v103, %v111
    %v119 = vunpack.c.l.b16 %v83
    %v120 = vunpack.c.l.b16 %v84
    %v121 = vunpack.c.l.b16 %v85
    %v122 = vunpack.c.l.b16 %v86
    %v123 = vpack.c.b16 %v120, %v119
    %v124 = vpack.c.b16 %v122, %v121
    %v143 = vunpack.c.l.b16 %v87
    %v144 = vunpack.c.h.b16 %v87
    %v145 = vunpack.c.l.b16 %v88
    %v146 = vunpack.c.h.b16 %v88
    %v147 = vunpack.c.l.b16 %v89
    %v148 = vunpack.c.h.b16 %v89
    %v149 = vunpack.c.l.b16 %v90
    %v150 = vunpack.c.h.b16 %v90
    %v151 = vunpack.c.l.b16 %v91
    %v152 = vunpack.c.h.b16 %v91
    %v153 = vunpack.c.l.b16 %v92
    %v154 = vunpack.c.h.b16 %v92
    %v155 = vunpack.c.l.b16 %v93
    %v156 = vunpack.c.h.b16 %v93
    %v157 = vunpack.c.l.b16 %v94
    %v158 = vunpack.c.h.b16 %v94
    %v159 = vunpack.c.l.b16 %v95
    %v160 = vunpack.c.h.b16 %v95
    %v161 = vunpack.c.l.b16 %v96
    %v162 = vunpack.c.h.b16 %v96
    %v163 = vunpack.c.l.b16 %v97
    %v164 = vunpack.c.h.b16 %v97
    %v165 = vunpack.c.l.b16 %v98
    %v166 = vunpack.c.h.b16 %v98
    %v167 = vunpack.c.l.b16 %v99
    %v168 = vunpack.c.h.b16 %v99
    %v169 = vunpack.c.l.b16 %v100
    %v170 = vunpack.c.h.b16 %v100
    %v171 = vunpack.c.l.b16 %v101
    %v172 = vunpack.c.h.b16 %v101
    %v173 = vunpack.c.l.b16 %v102
    %v174 = vunpack.c.h.b16 %v102
    %v175 = vpack.c.b16 %v145, %v143
    %v176 = vpack.c.b16 %v146, %v144
    %v177 = vpack.c.b16 %v149, %v147
    %v178 = vpack.c.b16 %v150, %v148
    %v179 = vpack.c.b16 %v153, %v151
    %v180 = vpack.c.b16 %v154, %v152
    %v181 = vpack.c.b16 %v157, %v155
    %v182 = vpack.c.b16 %v158, %v156
    %v183 = vpack.c.b16 %v161, %v159
    %v184 = vpack.c.b16 %v162, %v160
    %v185 = vpack.c.b16 %v165, %v163
    %v186 = vpack.c.b16 %v166, %v164
    %v187 = vpack.c.b16 %v169, %v167
    %v188 = vpack.c.b16 %v170, %v168
    %v189 = vpack.c.b16 %v173, %v171
    %v190 = vpack.c.b16 %v174, %v172
    %207 = vmatprep.subr.bf16.mxu0 %v190
    %208 = vmatpush1.bf16.msra.mxu0 %v189
    %209 = vmatprep.subr.bf16.mxu0 %v188
    %210 = vmatpush1.bf16.msra.mxu0 %v187
    %211 = vmatprep.subr.bf16.mxu0 %v186
    %212 = vmatpush1.bf16.msra.mxu0 %v185
    %213 = vmatprep.subr.bf16.mxu0 %v184
    %214 = vmatpush1.bf16.msra.mxu0 %v183
    %215 = vmatprep.subr.bf16.mxu0 %v182
    %216 = vmatpush1.bf16.msra.mxu0 %v181
    %217 = vmatprep.subr.bf16.mxu0 %v180
    %218 = vmatpush1.bf16.msra.mxu0 %v179
    %219 = vmatprep.subr.bf16.mxu0 %v178
    %220 = vmatpush1.bf16.msra.mxu0 %v177
    %221 = vmatprep.subr.bf16.mxu0 %v176
    %222 = vmatpush1.bf16.msra.mxu0 %v175
    %223 = vmatprep.subr.bf16.mxu0 0
    %224 = vmatpush2.bf16.msra.mxu0 0
    %225 = vmatprep.subr.bf16.mxu0 0
    %226 = vmatpush2.bf16.msra.mxu0 0
    %227 = vmatprep.subr.bf16.mxu0 0
    %228 = vmatpush2.bf16.msra.mxu0 0
    %229 = vmatprep.subr.bf16.mxu0 0
    %230 = vmatpush2.bf16.msra.mxu0 0
    %231 = vmatprep.subr.bf16.mxu0 0
    %232 = vmatpush2.bf16.msra.mxu0 0
    %233 = vmatprep.subr.bf16.mxu0 0
    %234 = vmatpush2.bf16.msra.mxu0 0
    %235 = vmatprep.subr.bf16.mxu0 0
    %236 = vmatpush2.bf16.msra.mxu0 0
    %237 = vmatprep.subr.bf16.mxu0 0
    %238 = vmatpush2.bf16.msra.mxu0 0
    %239 = vmatprep.mubr.bf16.mxu0 0
    %240 = vmatmul.mubr.bf16.gmra.mxu0 %v123
    %v241 = vpop.f32.mrf.mxu0
    %v242 = vadd.f32 %v108, %v241
    %v243 = vpop.f32.mrf.mxu0
    %v244 = vadd.f32 %v112, %v243
    %v245 = vpop.f32.mrf.mxu0
    %v246 = vadd.f32 %v108, %v245
    %v247 = vpop.f32.mrf.mxu0
    %v248 = vadd.f32 %v112, %v247
    %249 = vmatprep.mubr.bf16.mxu0 0
    %250 = vmatmul.mubr.bf16.gmra.mxu0 %v124
    %v251 = vpop.f32.mrf.mxu0
    %v252 = vadd.f32 %v108, %v251
    %v253 = vpop.f32.mrf.mxu0
    %v254 = vadd.f32 %v112, %v253
    %v255 = vpop.f32.mrf.mxu0
    %v256 = vadd.f32 %v108, %v255
    %v257 = vpop.f32.mrf.mxu0
    %v258 = vadd.f32 %v112, %v257
    %259 = vdwg.mxu0
    %v260 = vmax.f32 %v242, 0.0
    %v261 = vmax.f32 %v244, 0.0
    %v262 = vmax.f32 %v246, 0.0
    %v263 = vmax.f32 %v248, 0.0
    %v264 = vmax.f32 %v252, 0.0
    %v265 = vmax.f32 %v254, 0.0
    %v266 = vmax.f32 %v256, 0.0
    %v267 = vmax.f32 %v258, 0.0
    %v268 = vpack.c.bf16 %v262, %v260
    %v269 = vpack.c.bf16 %v263, %v261
    %v270 = vpack.c.bf16 %v266, %v264
    %v271 = vpack.c.bf16 %v267, %v265
    %v272 = vld [vmem:[#allocation7] sm:$0xff]
    %v273 = vld [vmem:[#allocation7 + $0x8] sm:$0xff]
    %v274 = vld [vmem:[#allocation7 + $0x10] sm:$0xff]
    %v275 = vld [vmem:[#allocation7 + $0x18] sm:$0xff]
    %v276 = vld [vmem:[#allocation7 + $0x20] sm:$0xff]
    %v277 = vld [vmem:[#allocation7 + $0x28] sm:$0xff]
    %v278 = vld [vmem:[#allocation7 + $0x30] sm:$0xff]
    %v279 = vld [vmem:[#allocation7 + $0x38] sm:$0xff]
    %v280 = vld [vmem:[#allocation7 + $0x40] sm:$0xff]
    %v281 = vld [vmem:[#allocation7 + $0x48] sm:$0xff]
    %v282 = vld [vmem:[#allocation7 + $0x50] sm:$0xff]
    %v283 = vld [vmem:[#allocation7 + $0x58] sm:$0xff]
    %v284 = vld [vmem:[#allocation7 + $0x60] sm:$0xff]
    %v285 = vld [vmem:[#allocation7 + $0x68] sm:$0xff]
    %v286 = vld [vmem:[#allocation7 + $0x70] sm:$0xff]
    %v287 = vld [vmem:[#allocation7 + $0x78] sm:$0xff]
    %v288 = vld [vmem:[#allocation7 + $0x80] sm:$0xff]
    %v289 = vld [vmem:[#allocation7 + $0x88] sm:$0xff]
    %v290 = vld [vmem:[#allocation7 + $0x90] sm:$0xff]
    %v291 = vld [vmem:[#allocation7 + $0x98] sm:$0xff]
    %v292 = vld [vmem:[#allocation7 + $0xa0] sm:$0xff]
    %v293 = vld [vmem:[#allocation7 + $0xa8] sm:$0xff]
    %v294 = vld [vmem:[#allocation7 + $0xb0] sm:$0xff]
    %v295 = vld [vmem:[#allocation7 + $0xb8] sm:$0xff]
    %v296 = vld [vmem:[#allocation7 + $0xc0] sm:$0xff]
    %v297 = vld [vmem:[#allocation7 + $0xc8] sm:$0xff]
    %v298 = vld [vmem:[#allocation7 + $0xd0] sm:$0xff]
    %v299 = vld [vmem:[#allocation7 + $0xd8] sm:$0xff]
    %v300 = vld [vmem:[#allocation7 + $0xe0] sm:$0xff]
    %v301 = vld [vmem:[#allocation7 + $0xe8] sm:$0xff]
    %v302 = vld [vmem:[#allocation7 + $0xf0] sm:$0xff]
    %v303 = vld [vmem:[#allocation7 + $0xf8] sm:$0xff]
    %v304 = vld [vmem:[%s4] sm:$0x3]
    %v306 = vlaneseq
    %v307 = vshrl.u32 %v306, 7
    %v308 = vsub.s32 0, %v307
    %v309 = vrot.slane %v304, %v308
    %v310 = vlaneseq
    %v311 = vshrl.u32 %v310, 7
    %v312 = vsub.s32 1, %v311
    %v313 = vrot.slane %v304, %v312
    %v348 = vunpack.c.l.b16 %v272
    %v349 = vunpack.c.h.b16 %v272
    %v350 = vunpack.c.l.b16 %v273
    %v351 = vunpack.c.h.b16 %v273
    %v352 = vunpack.c.l.b16 %v274
    %v353 = vunpack.c.h.b16 %v274
    %v354 = vunpack.c.l.b16 %v275
    %v355 = vunpack.c.h.b16 %v275
    %v356 = vunpack.c.l.b16 %v276
    %v357 = vunpack.c.h.b16 %v276
    %v358 = vunpack.c.l.b16 %v277
    %v359 = vunpack.c.h.b16 %v277
    %v360 = vunpack.c.l.b16 %v278
    %v361 = vunpack.c.h.b16 %v278
    %v362 = vunpack.c.l.b16 %v279
    %v363 = vunpack.c.h.b16 %v279
    %v364 = vunpack.c.l.b16 %v280
    %v365 = vunpack.c.h.b16 %v280
    %v366 = vunpack.c.l.b16 %v281
    %v367 = vunpack.c.h.b16 %v281
    %v368 = vunpack.c.l.b16 %v282
    %v369 = vunpack.c.h.b16 %v282
    %v370 = vunpack.c.l.b16 %v283
    %v371 = vunpack.c.h.b16 %v283
    %v372 = vunpack.c.l.b16 %v284
    %v373 = vunpack.c.h.b16 %v284
    %v374 = vunpack.c.l.b16 %v285
    %v375 = vunpack.c.h.b16 %v285
    %v376 = vunpack.c.l.b16 %v286
    %v377 = vunpack.c.h.b16 %v286
    %v378 = vunpack.c.l.b16 %v287
    %v379 = vunpack.c.h.b16 %v287
    %v380 = vunpack.c.l.b16 %v288
    %v381 = vunpack.c.h.b16 %v288
    %v382 = vunpack.c.l.b16 %v289
    %v383 = vunpack.c.h.b16 %v289
    %v384 = vunpack.c.l.b16 %v290
    %v385 = vunpack.c.h.b16 %v290
    %v386 = vunpack.c.l.b16 %v291
    %v387 = vunpack.c.h.b16 %v291
    %v388 = vunpack.c.l.b16 %v292
    %v389 = vunpack.c.h.b16 %v292
    %v390 = vunpack.c.l.b16 %v293
    %v391 = vunpack.c.h.b16 %v293
    %v392 = vunpack.c.l.b16 %v294
    %v393 = vunpack.c.h.b16 %v294
    %v394 = vunpack.c.l.b16 %v295
    %v395 = vunpack.c.h.b16 %v295
    %v396 = vunpack.c.l.b16 %v296
    %v397 = vunpack.c.h.b16 %v296
    %v398 = vunpack.c.l.b16 %v297
    %v399 = vunpack.c.h.b16 %v297
    %v400 = vunpack.c.l.b16 %v298
    %v401 = vunpack.c.h.b16 %v298
    %v402 = vunpack.c.l.b16 %v299
    %v403 = vunpack.c.h.b16 %v299
    %v404 = vunpack.c.l.b16 %v300
    %v405 = vunpack.c.h.b16 %v300
    %v406 = vunpack.c.l.b16 %v301
    %v407 = vunpack.c.h.b16 %v301
    %v408 = vunpack.c.l.b16 %v302
    %v409 = vunpack.c.h.b16 %v302
    %v410 = vunpack.c.l.b16 %v303
    %v411 = vunpack.c.h.b16 %v303
    %v412 = vpack.c.b16 %v350, %v348
    %v413 = vpack.c.b16 %v351, %v349
    %v414 = vpack.c.b16 %v354, %v352
    %v415 = vpack.c.b16 %v355, %v353
    %v416 = vpack.c.b16 %v358, %v356
    %v417 = vpack.c.b16 %v359, %v357
    %v418 = vpack.c.b16 %v362, %v360
    %v419 = vpack.c.b16 %v363, %v361
    %v420 = vpack.c.b16 %v366, %v364
    %v421 = vpack.c.b16 %v367, %v365
    %v422 = vpack.c.b16 %v370, %v368
    %v423 = vpack.c.b16 %v371, %v369
    %v424 = vpack.c.b16 %v374, %v372
    %v425 = vpack.c.b16 %v375, %v373
    %v426 = vpack.c.b16 %v378, %v376
    %v427 = vpack.c.b16 %v379, %v377
    %v428 = vpack.c.b16 %v382, %v380
    %v429 = vpack.c.b16 %v383, %v381
    %v430 = vpack.c.b16 %v386, %v384
    %v431 = vpack.c.b16 %v387, %v385
    %v432 = vpack.c.b16 %v390, %v388
    %v433 = vpack.c.b16 %v391, %v389
    %v434 = vpack.c.b16 %v394, %v392
    %v435 = vpack.c.b16 %v395, %v393
    %v436 = vpack.c.b16 %v398, %v396
    %v437 = vpack.c.b16 %v399, %v397
    %v438 = vpack.c.b16 %v402, %v400
    %v439 = vpack.c.b16 %v403, %v401
    %v440 = vpack.c.b16 %v406, %v404
    %v441 = vpack.c.b16 %v407, %v405
    %v442 = vpack.c.b16 %v410, %v408
    %v443 = vpack.c.b16 %v411, %v409
    %476 = vmatprep.subr.bf16.mxu0 %v427
    %477 = vmatpush1.bf16.msra.mxu0 %v426
    %478 = vmatprep.subr.bf16.mxu0 %v425
    %479 = vmatpush1.bf16.msra.mxu0 %v424
    %480 = vmatprep.subr.bf16.mxu0 %v423
    %481 = vmatpush1.bf16.msra.mxu0 %v422
    %482 = vmatprep.subr.bf16.mxu0 %v421
    %483 = vmatpush1.bf16.msra.mxu0 %v420
    %484 = vmatprep.subr.bf16.mxu0 %v419
    %485 = vmatpush1.bf16.msra.mxu0 %v418
    %486 = vmatprep.subr.bf16.mxu0 %v417
    %487 = vmatpush1.bf16.msra.mxu0 %v416
    %488 = vmatprep.subr.bf16.mxu0 %v415
    %489 = vmatpush1.bf16.msra.mxu0 %v414
    %490 = vmatprep.subr.bf16.mxu0 %v413
    %491 = vmatpush1.bf16.msra.mxu0 %v412
    %492 = vmatprep.subr.bf16.mxu0 %v443
    %493 = vmatpush2.bf16.msra.mxu0 %v442
    %494 = vmatprep.subr.bf16.mxu0 %v441
    %495 = vmatpush2.bf16.msra.mxu0 %v440
    %496 = vmatprep.subr.bf16.mxu0 %v439
    %497 = vmatpush2.bf16.msra.mxu0 %v438
    %498 = vmatprep.subr.bf16.mxu0 %v437
    %499 = vmatpush2.bf16.msra.mxu0 %v436
    %500 = vmatprep.subr.bf16.mxu0 %v435
    %501 = vmatpush2.bf16.msra.mxu0 %v434
    %502 = vmatprep.subr.bf16.mxu0 %v433
    %503 = vmatpush2.bf16.msra.mxu0 %v432
    %504 = vmatprep.subr.bf16.mxu0 %v431
    %505 = vmatpush2.bf16.msra.mxu0 %v430
    %506 = vmatprep.subr.bf16.mxu0 %v429
    %507 = vmatpush2.bf16.msra.mxu0 %v428
    %508 = vmatprep.mubr.bf16.mxu0 %v269
    %509 = vmatmul.mubr.bf16.gmra.mxu0 %v268
    %v510 = vpop.f32.mrf.mxu0
    %v511 = vadd.f32 %v309, %v510
    %v512 = vpop.f32.mrf.mxu0
    %v513 = vadd.f32 %v313, %v512
    %v514 = vpop.f32.mrf.mxu0
    %v515 = vadd.f32 %v309, %v514
    %v516 = vpop.f32.mrf.mxu0
    %v517 = vadd.f32 %v313, %v516
    %518 = vmatprep.mubr.bf16.mxu0 %v271
    %519 = vmatmul.mubr.bf16.gmra.mxu0 %v270
    %v520 = vpop.f32.mrf.mxu0
    %v521 = vadd.f32 %v309, %v520
    %v522 = vpop.f32.mrf.mxu0
    %v523 = vadd.f32 %v313, %v522
    %v524 = vpop.f32.mrf.mxu0
    %v525 = vadd.f32 %v309, %v524
    %v526 = vpop.f32.mrf.mxu0
    %v527 = vadd.f32 %v313, %v526
    %528 = vdwg.mxu0
    %v529 = vmax.f32 %v511, 0.0
    %v530 = vmax.f32 %v513, 0.0
    %v531 = vmax.f32 %v515, 0.0
    %v532 = vmax.f32 %v517, 0.0
    %v533 = vmax.f32 %v521, 0.0
    %v534 = vmax.f32 %v523, 0.0
    %v535 = vmax.f32 %v525, 0.0
    %v536 = vmax.f32 %v527, 0.0
    %v537 = vpack.c.bf16 %v531, %v529
    %v538 = vpack.c.bf16 %v532, %v530
    %v539 = vpack.c.bf16 %v535, %v533
    %v540 = vpack.c.bf16 %v536, %v534
    %v541 = vld [vmem:[#allocation8] sm:$0xf]
    %v542 = vld [vmem:[#allocation8 + $0x4] sm:$0xf]
    %v543 = vld [vmem:[#allocation8 + $0x8] sm:$0xf]
    %v544 = vld [vmem:[#allocation8 + $0xc] sm:$0xf]
    %v545 = vld [vmem:[#allocation8 + $0x10] sm:$0xf]
    %v546 = vld [vmem:[#allocation8 + $0x14] sm:$0xf]
    %v547 = vld [vmem:[#allocation8 + $0x18] sm:$0xf]
    %v548 = vld [vmem:[#allocation8 + $0x1c] sm:$0xf]
    %v549 = vld [vmem:[#allocation8 + $0x20] sm:$0xf]
    %v550 = vld [vmem:[#allocation8 + $0x24] sm:$0xf]
    %v551 = vld [vmem:[#allocation8 + $0x28] sm:$0xf]
    %v552 = vld [vmem:[#allocation8 + $0x2c] sm:$0xf]
    %v553 = vld [vmem:[#allocation8 + $0x30] sm:$0xf]
    %v554 = vld [vmem:[#allocation8 + $0x34] sm:$0xf]
    %v555 = vld [vmem:[#allocation8 + $0x38] sm:$0xf]
    %v556 = vld [vmem:[#allocation8 + $0x3c] sm:$0xf]
    %v557 = vld [vmem:[#allocation8 + $0x40] sm:$0xf]
    %v558 = vld [vmem:[#allocation8 + $0x44] sm:$0xf]
    %v559 = vld [vmem:[#allocation8 + $0x48] sm:$0xf]
    %v560 = vld [vmem:[#allocation8 + $0x4c] sm:$0xf]
    %v561 = vld [vmem:[#allocation8 + $0x50] sm:$0xf]
    %v562 = vld [vmem:[#allocation8 + $0x54] sm:$0xf]
    %v563 = vld [vmem:[#allocation8 + $0x58] sm:$0xf]
    %v564 = vld [vmem:[#allocation8 + $0x5c] sm:$0xf]
    %v565 = vld [vmem:[#allocation8 + $0x60] sm:$0xf]
    %v566 = vld [vmem:[#allocation8 + $0x64] sm:$0xf]
    %v567 = vld [vmem:[#allocation8 + $0x68] sm:$0xf]
    %v568 = vld [vmem:[#allocation8 + $0x6c] sm:$0xf]
    %v569 = vld [vmem:[#allocation8 + $0x70] sm:$0xf]
    %v570 = vld [vmem:[#allocation8 + $0x74] sm:$0xf]
    %v571 = vld [vmem:[#allocation8 + $0x78] sm:$0xf]
    %v572 = vld [vmem:[#allocation8 + $0x7c] sm:$0xf]
    %v573 = vld [vmem:[%s6] sm:$0x1]
    %v575 = vlaneseq
    %v576 = vshrl.u32 %v575, 7
    %v577 = vsub.s32 0, %v576
    %v578 = vrot.slane %v573, %v577
    %v612 = vunpack.c.l.b16 %v541
    %v613 = vunpack.c.l.b16 %v542
    %v614 = vunpack.c.l.b16 %v543
    %v615 = vunpack.c.l.b16 %v544
    %v616 = vunpack.c.l.b16 %v545
    %v617 = vunpack.c.l.b16 %v546
    %v618 = vunpack.c.l.b16 %v547
    %v619 = vunpack.c.l.b16 %v548
    %v620 = vunpack.c.l.b16 %v549
    %v621 = vunpack.c.l.b16 %v550
    %v622 = vunpack.c.l.b16 %v551
    %v623 = vunpack.c.l.b16 %v552
    %v624 = vunpack.c.l.b16 %v553
    %v625 = vunpack.c.l.b16 %v554
    %v626 = vunpack.c.l.b16 %v555
    %v627 = vunpack.c.l.b16 %v556
    %v628 = vunpack.c.l.b16 %v557
    %v629 = vunpack.c.l.b16 %v558
    %v630 = vunpack.c.l.b16 %v559
    %v631 = vunpack.c.l.b16 %v560
    %v632 = vunpack.c.l.b16 %v561
    %v633 = vunpack.c.l.b16 %v562
    %v634 = vunpack.c.l.b16 %v563
    %v635 = vunpack.c.l.b16 %v564
    %v636 = vunpack.c.l.b16 %v565
    %v637 = vunpack.c.l.b16 %v566
    %v638 = vunpack.c.l.b16 %v567
    %v639 = vunpack.c.l.b16 %v568
    %v640 = vunpack.c.l.b16 %v569
    %v641 = vunpack.c.l.b16 %v570
    %v642 = vunpack.c.l.b16 %v571
    %v643 = vunpack.c.l.b16 %v572
    %v644 = vpack.c.b16 %v613, %v612
    %v645 = vpack.c.b16 %v615, %v614
    %v646 = vpack.c.b16 %v617, %v616
    %v647 = vpack.c.b16 %v619, %v618
    %v648 = vpack.c.b16 %v621, %v620
    %v649 = vpack.c.b16 %v623, %v622
    %v650 = vpack.c.b16 %v625, %v624
    %v651 = vpack.c.b16 %v627, %v626
    %v652 = vpack.c.b16 %v629, %v628
    %v653 = vpack.c.b16 %v631, %v630
    %v654 = vpack.c.b16 %v633, %v632
    %v655 = vpack.c.b16 %v635, %v634
    %v656 = vpack.c.b16 %v637, %v636
    %v657 = vpack.c.b16 %v639, %v638
    %v658 = vpack.c.b16 %v641, %v640
    %v659 = vpack.c.b16 %v643, %v642
    %676 = vmatprep.subr.bf16.mxu0 0
    %677 = vmatpush1.bf16.msra.mxu0 %v651
    %678 = vmatprep.subr.bf16.mxu0 0
    %679 = vmatpush1.bf16.msra.mxu0 %v650
    %680 = vmatprep.subr.bf16.mxu0 0
    %681 = vmatpush1.bf16.msra.mxu0 %v649
    %682 = vmatprep.subr.bf16.mxu0 0
    %683 = vmatpush1.bf16.msra.mxu0 %v648
    %684 = vmatprep.subr.bf16.mxu0 0
    %685 = vmatpush1.bf16.msra.mxu0 %v647
    %686 = vmatprep.subr.bf16.mxu0 0
    %687 = vmatpush1.bf16.msra.mxu0 %v646
    %688 = vmatprep.subr.bf16.mxu0 0
    %689 = vmatpush1.bf16.msra.mxu0 %v645
    %690 = vmatprep.subr.bf16.mxu0 0
    %691 = vmatpush1.bf16.msra.mxu0 %v644
    %692 = vmatprep.subr.bf16.mxu0 0
    %693 = vmatpush2.bf16.msra.mxu0 %v659
    %694 = vmatprep.subr.bf16.mxu0 0
    %695 = vmatpush2.bf16.msra.mxu0 %v658
    %696 = vmatprep.subr.bf16.mxu0 0
    %697 = vmatpush2.bf16.msra.mxu0 %v657
    %698 = vmatprep.subr.bf16.mxu0 0
    %699 = vmatpush2.bf16.msra.mxu0 %v656
    %700 = vmatprep.subr.bf16.mxu0 0
    %701 = vmatpush2.bf16.msra.mxu0 %v655
    %702 = vmatprep.subr.bf16.mxu0 0
    %703 = vmatpush2.bf16.msra.mxu0 %v654
    %704 = vmatprep.subr.bf16.mxu0 0
    %705 = vmatpush2.bf16.msra.mxu0 %v653
    %706 = vmatprep.subr.bf16.mxu0 0
    %707 = vmatpush2.bf16.msra.mxu0 %v652
    %708 = vmatprep.mubr.bf16.mxu0 %v538
    %709 = vmatmul.mubr.bf16.gmra.mxu0 %v537
    %v710 = vpop.f32.mrf.mxu0
    %v711 = vadd.f32 %v578, %v710
    %v712 = vpop.f32.mrf.mxu0
    %v713 = vpop.f32.mrf.mxu0
    %v714 = vadd.f32 %v578, %v713
    %v715 = vpop.f32.mrf.mxu0
    %716 = vmatprep.mubr.bf16.mxu0 %v540
    %717 = vmatmul.mubr.bf16.gmra.mxu0 %v539
    %v718 = vpop.f32.mrf.mxu0
    %v719 = vadd.f32 %v578, %v718
    %v720 = vpop.f32.mrf.mxu0
    %v721 = vpop.f32.mrf.mxu0
    %v722 = vadd.f32 %v578, %v721
    %v723 = vpop.f32.mrf.mxu0
    %724 = vdwg.mxu0
    %725 = vst [vmem:[#allocation10] sm:$0xff] %v711
    %726 = vst [vmem:[#allocation10 + $0x8] sm:$0xff] %v714
    %727 = vst [vmem:[#allocation10 + $0x10] sm:$0xff] %v719
    %728 = vst [vmem:[#allocation10 + $0x18] sm:$0xff] %v722
    // Predicated region
    $region46: #{tpu_custom_call.1} parent=1 // pred_check
      _
    $region47: #{tpu_custom_call.1} parent=1 // pred_check_branch
      %730 = sbr.rel (0) target = $region49
    $region48: #{tpu_custom_call.1} parent=1 // pred_region
      %s732 = ssub.s32 512, 512
      %733 = vsyncadd [#allocation4], %s732
      %s734 = sshll.u32 [#allocation10], 4
      %s735 = int_to_ptr.vmem [resolvable:$true] %s734
      %740 = dma.vmem_to_hbm [thread:$0]  %s735, 512, %s7, [#allocation4], 128, 128, 8
    $region49: #{tpu_custom_call.1} parent=1 // pred_fallthru
      _
    // Predicated region
    $region50: #{tpu_custom_call.1} parent=1 // pred_check
      _
    $region51: #{tpu_custom_call.1} parent=1 // pred_check_branch
      %742 = sbr.rel (0) target = $region53
    $region52: #{tpu_custom_call.1} parent=1 // pred_region
      %743 = dma.done [#allocation4], 512
    $region53: #{tpu_custom_call.1} parent=1 // pred_fallthru
      _
    %744 = vsyncpa [#allocation3], 1
    %745 = vsyncpa [#allocation6], 1
    %746 = vsyncpa [#allocation9], 1
    %747 = vsyncpa [#allocation4], 1

</llo_original>
